<compile_context>
chip_gen: v7x
topology: tpu7x:2x2x1
jax: 0.10.0
libtpu: 0.0.40
codegen_flags: <defaults>
</compile_context>

<pallas_src>
import functools
import math

import jax
import jax.numpy as jnp
from jax.experimental import pallas as pl
from jax.experimental.pallas import tpu as pltpu


# ---------------------------------------------------------------------------
# In-kernel helpers
# ---------------------------------------------------------------------------
def _layernorm(x, gamma, beta, eps=1e-5):
    mu = jnp.mean(x, axis=-1, keepdims=True)
    xc = x - mu
    var = jnp.mean(xc * xc, axis=-1, keepdims=True)
    inv = jax.lax.rsqrt(var + eps)
    return xc * inv * gamma + beta


def _full_spec(shape):
    """BlockSpec for a grid-invariant (weight) operand loaded whole."""
    n = len(shape)
    return pl.BlockSpec(shape, lambda *_, n=n: (0,) * n)


def _pick_tile(dim, target, quantum):
    """Largest multiple of `quantum` dividing `dim` and <= target, else `dim`."""
    if dim <= target:
        return dim
    if dim % quantum == 0:
        t = (target // quantum) * quantum
        while t >= quantum:
            if dim % t == 0:
                return t
            t -= quantum
    return dim


# ---------------------------------------------------------------------------
# Tiled linear kernel: [B, S, Din] @ [Din, Dout] + b  (bf16 MXU, f32 out)
# ---------------------------------------------------------------------------
def linear_kernel(x_ref, w_ref, b_ref, o_ref):
    x = x_ref[0].astype(jnp.bfloat16)                      # [TM, Din]
    o_ref[0] = jnp.dot(x, w_ref[...],
                       preferred_element_type=jnp.float32) + b_ref[...]


def linear(x, w, b):
    B, S, Din = x.shape
    Dout = w.shape[1]
    TM = _pick_tile(S, 256, 8)          # sublane-aligned row tiles
    TN = _pick_tile(Dout, 1024, 128)    # lane-dense output tiles (mult. of 128)
    grid = (B, S // TM, Dout // TN)
    return pl.pallas_call(
        linear_kernel,
        out_shape=jax.ShapeDtypeStruct((B, S, Dout), jnp.float32),
        grid=grid,
        in_specs=[
            pl.BlockSpec((1, TM, Din), lambda bi, si, ni: (bi, si, 0)),
            pl.BlockSpec((Din, TN), lambda bi, si, ni: (0, ni)),
            pl.BlockSpec((1, TN), lambda bi, si, ni: (0, ni)),
        ],
        out_specs=pl.BlockSpec((1, TM, TN), lambda bi, si, ni: (bi, si, ni)),
        compiler_params=pltpu.CompilerParams(
            dimension_semantics=("parallel", "parallel", "parallel")),
    )(x, w, b)


# ---------------------------------------------------------------------------
# 1) LayerNorm1 + fused QKV projection  (one [H, 3H] matmul, scale folded in Q)
# ---------------------------------------------------------------------------
def qkv_kernel(x_ref, g_ref, be_ref, wqkv_ref, bqkv_ref,
               q_ref, k_ref, v_ref, *, hidden_dim, scale):
    x = x_ref[0]                                            # [TQ, H] f32
    xn = _layernorm(x, g_ref[...], be_ref[...])
    qkv = jnp.dot(xn.astype(jnp.bfloat16), wqkv_ref[...],
                  preferred_element_type=jnp.float32) + bqkv_ref[...]   # [TQ, 3H]
    H = hidden_dim
    q_ref[0] = (qkv[:, :H] * scale).astype(q_ref.dtype)     # fold 1/sqrt(hd) into Q
    k_ref[0] = qkv[:, H:2 * H].astype(k_ref.dtype)
    v_ref[0] = qkv[:, 2 * H:].astype(v_ref.dtype)


def qkv_project(x, ln_g, ln_b, wqkv, bqkv, head_dim, TQ):
    B, S, H = x.shape
    kern = functools.partial(qkv_kernel, hidden_dim=H,
                             scale=1.0 / math.sqrt(head_dim))
    out_sd = jax.ShapeDtypeStruct((B, S, H), jnp.bfloat16)
    tile_spec = pl.BlockSpec((1, TQ, H), lambda bi, si: (bi, si, 0))
    return pl.pallas_call(
        kern,
        out_shape=(out_sd, out_sd, out_sd),
        grid=(B, S // TQ),
        in_specs=[
            tile_spec,
            _full_spec(ln_g.shape), _full_spec(ln_b.shape),
            _full_spec(wqkv.shape), _full_spec(bqkv.shape),
        ],
        out_specs=(tile_spec, tile_spec, tile_spec),
        compiler_params=pltpu.CompilerParams(
            dimension_semantics=("parallel", "parallel")),
    )(x, ln_g, ln_b, wqkv, bqkv)


# ---------------------------------------------------------------------------
# 2) Flash attention (batched heads, online softmax over key tiles)
#    q/k/v layout: [B, nh, S, hd] (bf16), key mask: [B, 1, S] (f32)
# ---------------------------------------------------------------------------
def flash_attn_kernel(q_ref, k_ref, v_ref, mask_ref, o_ref,
                      m_sc, l_sc, acc_sc):
    ki = pl.program_id(2)

    @pl.when(ki == 0)
    def _():
        m_sc[...] = jnp.full(m_sc.shape, -jnp.inf, m_sc.dtype)
        l_sc[...] = jnp.zeros(l_sc.shape, l_sc.dtype)
        acc_sc[...] = jnp.zeros(acc_sc.shape, acc_sc.dtype)

    q = q_ref[0]                                            # [nh, TQ, hd] bf16 (pre-scaled)
    k = k_ref[0]                                            # [nh, TK, hd] bf16
    v = v_ref[0]                                            # [nh, TK, hd] bf16
    neg = ((1.0 - mask_ref[0]) * (-1e9))[:, None, :]        # [1, 1, TK] additive key mask

    s = jnp.einsum('hqd,hkd->hqk', q, k,
                   preferred_element_type=jnp.float32)      # [nh, TQ, TK] f32
    s = s + neg

    m_prev = m_sc[...]                                      # [nh, TQ, 1]
    m_new = jnp.maximum(m_prev, jnp.max(s, axis=-1, keepdims=True))
    alpha = jnp.exp(m_prev - m_new)
    p = jnp.exp(s - m_new)                                  # [nh, TQ, TK] f32
    l_sc[...] = alpha * l_sc[...] + jnp.sum(p, axis=-1, keepdims=True)
    acc_sc[...] = alpha * acc_sc[...] + jnp.einsum(
        'hqk,hkd->hqd', p.astype(v.dtype), v,
        preferred_element_type=jnp.float32)                 # [nh, TQ, hd]
    m_sc[...] = m_new

    @pl.when(ki == pl.num_programs(2) - 1)
    def _():
        o_ref[0] = acc_sc[...] * pl.reciprocal(l_sc[...], approx=True)


def flash_attention(q4, k4, v4, key_mask3, TQ, TK):
    B, NH, S, HD = q4.shape
    grid = (B, S // TQ, S // TK)
    return pl.pallas_call(
        flash_attn_kernel,
        out_shape=jax.ShapeDtypeStruct((B, NH, S, HD), jnp.float32),
        grid=grid,
        in_specs=[
            pl.BlockSpec((1, NH, TQ, HD), lambda bi, qi, ki: (bi, 0, qi, 0)),
            pl.BlockSpec((1, NH, TK, HD), lambda bi, qi, ki: (bi, 0, ki, 0)),
            pl.BlockSpec((1, NH, TK, HD), lambda bi, qi, ki: (bi, 0, ki, 0)),
            pl.BlockSpec((1, 1, TK), lambda bi, qi, ki: (bi, 0, ki)),
        ],
        out_specs=pl.BlockSpec((1, NH, TQ, HD), lambda bi, qi, ki: (bi, 0, qi, 0)),
        scratch_shapes=[
            pltpu.VMEM((NH, TQ, 1), jnp.float32),   # running max
            pltpu.VMEM((NH, TQ, 1), jnp.float32),   # running denom
            pltpu.VMEM((NH, TQ, HD), jnp.float32),  # running numerator
        ],
        compiler_params=pltpu.CompilerParams(
            dimension_semantics=("parallel", "parallel", "arbitrary")),
    )(q4, k4, v4, key_mask3)


# ---------------------------------------------------------------------------
# 3) Output projection + residual + LayerNorm2 + FFN + residual
# ---------------------------------------------------------------------------
def post_attn_kernel(x_ref, attn_ref, wo_ref, bo_ref,
                     ln2g_ref, ln2b_ref, w1_ref, b1_ref, w2_ref, b2_ref,
                     o_ref):
    x = x_ref[0]                                            # [TQ, H] f32 (residual)
    a = attn_ref[0].astype(jnp.bfloat16)                    # [TQ, H]
    proj = jnp.dot(a, wo_ref[...],
                   preferred_element_type=jnp.float32) + bo_ref[...]
    x1 = x + proj                                           # dropout = identity (eval)

    x1n = _layernorm(x1, ln2g_ref[...], ln2b_ref[...])
    h1 = jnp.dot(x1n.astype(jnp.bfloat16), w1_ref[...],
                 preferred_element_type=jnp.float32) + b1_ref[...]
    h1 = jax.nn.gelu(h1, approximate=False)                 # nn.GELU() default = exact erf
    ffn = jnp.dot(h1.astype(jnp.bfloat16), w2_ref[...],
                  preferred_element_type=jnp.float32) + b2_ref[...]
    o_ref[0] = x1 + ffn


def post_attn_ffn(x, attn, p, TQ):
    B, S, H = x.shape
    tile_spec = pl.BlockSpec((1, TQ, H), lambda bi, si: (bi, si, 0))
    return pl.pallas_call(
        post_attn_kernel,
        out_shape=jax.ShapeDtypeStruct((B, S, H), jnp.float32),
        grid=(B, S // TQ),
        in_specs=[
            tile_spec, tile_spec,
            _full_spec(p["wo"].shape), _full_spec(p["bo"].shape),
            _full_spec(p["ln2_g"].shape), _full_spec(p["ln2_b"].shape),
            _full_spec(p["w1"].shape), _full_spec(p["b1"].shape),
            _full_spec(p["w2"].shape), _full_spec(p["b2"].shape),
        ],
        out_specs=tile_spec,
        compiler_params=pltpu.CompilerParams(
            dimension_semantics=("parallel", "parallel")),
    )(x, attn, p["wo"], p["bo"], p["ln2_g"], p["ln2_b"],
      p["w1"], p["b1"], p["w2"], p["b2"])


# ---------------------------------------------------------------------------
# Encoder layer (pre-norm MHA + FFN), assembled from the three kernels above
# ---------------------------------------------------------------------------
def encoder_layer(x, key_mask3, p, num_heads):
    B, S, H = x.shape
    head_dim = H // num_heads
    TQ = _pick_tile(S, 256, 8)     # query / row tiles (sublane-aligned)
    TK = _pick_tile(S, 512, 128)   # key tiles (lane-aligned for the mask block)

    q, k, v = qkv_project(x, p["ln1_g"], p["ln1_b"], p["wqkv"], p["bqkv"],
                          head_dim, TQ)

    # Head split/merge are glue reshapes/transposes handled by XLA.
    def to_heads(t):
        return t.reshape(B, S, num_heads, head_dim).transpose(0, 2, 1, 3)

    attn = flash_attention(to_heads(q), to_heads(k), to_heads(v), key_mask3, TQ, TK)
    attn = attn.transpose(0, 2, 1, 3).reshape(B, S, H)      # [B, S, H] f32

    return post_attn_ffn(x, attn, p, TQ)


# ---------------------------------------------------------------------------
# Deterministic parameter init (shapes follow HybridOptimizationFramework)
# Matmul weights stored bf16; biases / LayerNorm / embeddings stay f32.
# ---------------------------------------------------------------------------
def init_params(key, vocab_size, emb_dim, hidden_dim, num_layers, max_pos=4096):
    ffn_dim = 4 * hidden_dim

    def dense(k, din, dout):
        w = (jax.random.normal(k, (din, dout), jnp.float32) /
             math.sqrt(din)).astype(jnp.bfloat16)
        b = jnp.zeros((1, dout), jnp.float32)
        return w, b

    keys = jax.random.split(key, 4 + num_layers)
    params = {
        "tok_emb": jax.random.normal(keys[0], (vocab_size, emb_dim), jnp.float32) * 0.02,
        "pos_emb": jax.random.normal(keys[1], (max_pos, emb_dim), jnp.float32) * 0.02,
    }
    params["in_w"], params["in_b"] = dense(keys[2], emb_dim, hidden_dim)
    params["out_w"], params["out_b"] = dense(keys[3], hidden_dim, vocab_size)

    layers = []
    for i in range(num_layers):
        lk = jax.random.split(keys[4 + i], 6)
        lp = {
            "ln1_g": jnp.ones((1, hidden_dim), jnp.float32),
            "ln1_b": jnp.zeros((1, hidden_dim), jnp.float32),
            "ln2_g": jnp.ones((1, hidden_dim), jnp.float32),
            "ln2_b": jnp.zeros((1, hidden_dim), jnp.float32),
        }
        wq, bq = dense(lk[0], hidden_dim, hidden_dim)
        wk, bk = dense(lk[1], hidden_dim, hidden_dim)
        wv, bv = dense(lk[2], hidden_dim, hidden_dim)
        # Fused QKV weight [H, 3H] / bias [1, 3H] (single MXU op in-kernel).
        lp["wqkv"] = jnp.concatenate([wq, wk, wv], axis=1)
        lp["bqkv"] = jnp.concatenate([bq, bk, bv], axis=1)
        lp["wo"], lp["bo"] = dense(lk[3], hidden_dim, hidden_dim)
        lp["w1"], lp["b1"] = dense(lk[4], hidden_dim, ffn_dim)
        lp["w2"], lp["b2"] = dense(lk[5], ffn_dim, hidden_dim)
        layers.append(lp)
    params["layers"] = layers
    return params


# ---------------------------------------------------------------------------
# Forward pass (mirrors HybridOptimizationFramework.forward, labels=None)
# ---------------------------------------------------------------------------
def hof_forward(params, input_ids, num_heads, pad_token_id=0):
    B, S = input_ids.shape
    attention_mask = (input_ids != pad_token_id).astype(jnp.float32)     # [B, S]

    # embeddings (gather is glue)
    tok = jnp.take(params["tok_emb"], input_ids, axis=0)                 # [B, S, E]
    pos = params["pos_emb"][:S][None, :, :]                              # [1, S, E]
    emb = tok + pos                                                      # dropout: identity

    # TODO(synk): DSR not defined in reference; untrained retriever selects all
    # valid tokens -> selection_mask == attention_mask.
    selection_mask = attention_mask

    hidden = linear(emb, params["in_w"], params["in_b"])                 # input_projection

    key_mask3 = (selection_mask * attention_mask).reshape(B, 1, S)
    for lp in params["layers"]:
        # TODO(synk): RCKV empty cache -> cached K/V fully masked, equivalent to
        # masked self-attention over the current sequence only.
        hidden = encoder_layer(hidden, key_mask3, lp, num_heads)

    logits = linear(hidden, params["out_w"], params["out_b"])            # output_projection
    return logits, selection_mask


# ---------------------------------------------------------------------------
if __name__ == "__main__":
    B, S = 2, 16
    VOCAB, EMB, HID, NHEADS, NLAYERS = 64, 32, 32, 4, 2
    assert HID % NHEADS == 0

    key = jax.random.PRNGKey(0)
    k_param, k_ids = jax.random.split(key)

    params = init_params(k_param, VOCAB, EMB, HID, NLAYERS)

    input_ids = jax.random.randint(k_ids, (B, S), 1, VOCAB, dtype=jnp.int32)
    input_ids = input_ids.at[:, -2:].set(0)        # pad tokens -> exercises masking

    logits, selection_mask = hof_forward(params, input_ids, NHEADS, pad_token_id=0)
    logits = jax.block_until_ready(logits)

    assert logits.shape == (B, S, VOCAB)
    assert bool(jnp.all(jnp.isfinite(logits)))
    print("KERNEL_OK")
</pallas_src>

<mosaic_0001>
module attributes {stable_mosaic.version = 11 : i64} {
  func.func @linear_kernel(%arg0: i32, %arg1: i32, %arg2: i32, %arg3: memref<1x16x32xf32, #tpu.memory_space<vmem>>, %arg4: memref<32x32xbf16, #tpu.memory_space<vmem>>, %arg5: memref<1x32xf32, #tpu.memory_space<vmem>>, %arg6: memref<1x16x32xf32, #tpu.memory_space<vmem>>) attributes {dimension_semantics = [#tpu.dimension_semantics<parallel>, #tpu.dimension_semantics<parallel>, #tpu.dimension_semantics<parallel>], iteration_bounds = array<i64: 2, 1, 1>, scalar_prefetch = 0 : i64, scratch_operands = 0 : i64, tpu.core_type = #tpu.core_type<tc>, window_params = [{transform_indices = @transform_0, window_bounds = array<i64: 1, 16, 32>}, {transform_indices = @transform_1, window_bounds = array<i64: 32, 32>}, {transform_indices = @transform_2, window_bounds = array<i64: 1, 32>}, {transform_indices = @transform_3, window_bounds = array<i64: 1, 16, 32>}]} {
    %c0 = arith.constant 0 : index
    %c0_0 = arith.constant 0 : index
    %c0_1 = arith.constant 0 : index
    %0 = vector.load %arg3[%c0, %c0_0, %c0_1] : memref<1x16x32xf32, #tpu.memory_space<vmem>>, vector<1x16x32xf32>
    %1 = vector.shape_cast %0 : vector<1x16x32xf32> to vector<16x32xf32>
    %2 = arith.truncf %1 : vector<16x32xf32> to vector<16x32xbf16>
    %c0_2 = arith.constant 0 : index
    %c0_3 = arith.constant 0 : index
    %3 = vector.load %arg4[%c0_2, %c0_3] : memref<32x32xbf16, #tpu.memory_space<vmem>>, vector<32x32xbf16>
    %cst = arith.constant dense<0.000000e+00> : vector<16x32xf32>
    %4 = tpu.matmul %2, %3, %cst {dimension_numbers = #tpu.dot_dimension_numbers<[1], [0], [0], [1], [0, 0, 1, 1], [], []>} : vector<16x32xbf16>, vector<32x32xbf16>, vector<16x32xf32> -> vector<16x32xf32>
    %c0_4 = arith.constant 0 : index
    %c0_5 = arith.constant 0 : index
    %5 = vector.load %arg5[%c0_4, %c0_5] : memref<1x32xf32, #tpu.memory_space<vmem>>, vector<1x32xf32>
    %6 = vector.broadcast %5 : vector<1x32xf32> to vector<16x32xf32>
    %7 = arith.addf %4, %6 : vector<16x32xf32>
    %c0_6 = arith.constant 0 : index
    %c0_7 = arith.constant 0 : index
    %c0_8 = arith.constant 0 : index
    %8 = vector.load %arg6[%c0_6, %c0_7, %c0_8] : memref<1x16x32xf32, #tpu.memory_space<vmem>>, vector<1x16x32xf32>
    %9 = vector.shape_cast %8 : vector<1x16x32xf32> to vector<16x32xf32>
    %10 = vector.shape_cast %7 : vector<16x32xf32> to vector<1x16x32xf32>
    tpu.vector_store %arg6[%c0_6, %c0_7, %c0_8], %10 {strides = array<i32>} : memref<1x16x32xf32, #tpu.memory_space<vmem>>, vector<1x16x32xf32>,
    return
  }
  func.func @transform_0(%arg0: i32, %arg1: i32, %arg2: i32) -> (i32, i32, i32) {
    %c0_i32 = arith.constant 0 : i32
    %c0_i32_0 = arith.constant 0 : i32
    return %arg0, %arg1, %c0_i32 : i32, i32, i32
  }
  func.func @transform_1(%arg0: i32, %arg1: i32, %arg2: i32) -> (i32, i32) {
    %c0_i32 = arith.constant 0 : i32
    %c0_i32_0 = arith.constant 0 : i32
    return %c0_i32, %arg2 : i32, i32
  }
  func.func @transform_2(%arg0: i32, %arg1: i32, %arg2: i32) -> (i32, i32) {
    %c0_i32 = arith.constant 0 : i32
    %c0_i32_0 = arith.constant 0 : i32
    return %c0_i32, %arg2 : i32, i32
  }
  func.func @transform_3(%arg0: i32, %arg1: i32, %arg2: i32) -> (i32, i32, i32) {
    %c0_i32 = arith.constant 0 : i32
    return %arg0, %arg1, %arg2 : i32, i32, i32
  }
}

</mosaic_0001>

<llo_original>
// kernel: tpu_custom_call.1
$region0: #{tpu_custom_call.1}
  #allocation0 [shape = 'u32[]', space=smem, size = 0x4, offset = 0x4, fixed_abs, tag = 'smem constant byte address 0x4 - core index']
  #allocation1 [shape = 'u32[144,128]{1,0:T(1,128)}', space=vmem, size = 0x12000, scoped, tag = 'internal scratch']
  %s0 = inlined_call_operand.hbm [shape: f32[2,16,32], index: 0, kind: input, shape index: {}]
  %s1 = inlined_call_operand.hbm [shape: bf16[32,32], index: 1, kind: input, shape index: {}]
  %s2 = inlined_call_operand.vmem [shape: f32[1,32], index: 2, kind: input, shape index: {}]
  %s3 = inlined_call_operand.hbm [shape: f32[2,16,32], index: 3, kind: output, shape index: {}]
  %s4 = sld [smem:[#allocation0]]
  $region53: #{tpu_custom_call.1} parent=0
    _
  %s6 = ssub.s32 1, %s4
  %s7 = scalar_select 0, %s6, %s4
  $region1: #{tpu_custom_call.1} parent=0
    #allocation2 [shape = 'u8[16384]{0}', space=vmem, size = 0x4000, scoped, tag = 'input window, operand 0']
    #allocation3 [shape = 's32[2]{0}', space=sflag, size = 0x8, scoped, tag = 'scoped memory for tpu_custom_call.1']
    #allocation4 [shape = 's32[2]{0}', space=sflag, size = 0x8, scoped, tag = 'scoped memory for tpu_custom_call.1']
    #allocation5 [shape = 'u8[8192]{0}', space=vmem, size = 0x2000, scoped, tag = 'input window, operand 1, single buffered']
    #allocation6 [shape = 's32[1]{0}', space=sflag, size = 0x4, scoped, tag = 'scoped memory for tpu_custom_call.1']
    #allocation7 [shape = 'u8[16384]{0}', space=vmem, size = 0x4000, scoped, tag = 'output window, operand 0']
    %8 = vsyncpa [#allocation3], 0
    %s9 = scalar_lea.sflag [#allocation3], 1
    %10 = vsyncpa %s9, 0
    %11 = vsyncpa [#allocation6], 0
    %12 = vsyncpa [#allocation4], 0
    %s13 = scalar_lea.sflag [#allocation4], 1
    %14 = vsyncpa %s13, 0
    loop: start=0, step=1, limit=4
    $region2: #{tpu_custom_call.1} parent=1 // loop_pre_header
      _
    $region3: #{tpu_custom_call.1} parent=1 // loop_header
      %s16 = sphi 0, %s20
      %p17 = scmp.ge.s32.totalorder %s16, 4
      %s23 = sphi 0, %s42
      %s24 = sphi 0, %s38
      %s25 = sphi 0, %s34
      %s26 = sphi 0, %s23
      %s27 = sphi 0, %s24
      %s28 = sphi 0, %s25
      %s29 = sphi 0, %s26
      %s30 = sphi 0, %s27
      %s31 = sphi 0, %s28
      %s47 = sphi 0, %s49
      %s50 = sphi 0, %s47
      %s51 = sphi 0, %s50
      %s67 = sphi 0, %s51
      %s73 = sphi 0, %s75
      %s76 = sphi 0, %s73
      %s77 = sphi 0, %s76
      %s93 = sphi 0, %s77
      %s99 = sphi 0, %s101
      %s102 = sphi 0, %s99
      %s103 = sphi 0, %s102
      %s119 = sphi 0, %s103
      %s129 = sphi 0, %s131
      %s132 = sphi 0, %s129
      %s133 = sphi 0, %s132
      %s149 = sphi 0, %s133
    $region4: #{tpu_custom_call.1} parent=1 // loop_header_branch
      %19 = sbr.rel (%p17) target = $region8
    $region5: #{tpu_custom_call.1} parent=1 // loop_body
      %s21 = ssub.s32 %s16, 1
      %s22 = ssub.s32 %s16, 2
      %s32 = sadd.s32 1, %s25
      %p33 = scmp.ge.s32.totalorder %s32, 1
      %s34 = scalar_select %p33, 0, %s32
      %s35 = sadd.s32 1, %s24
      %s36 = scalar_select %p33, %s35, %s24
      %p37 = scmp.ge.s32.totalorder %s36, 1
      %s38 = scalar_select %p37, 0, %s36
      %s39 = sadd.s32 1, %s23
      %s40 = scalar_select %p37, %s39, %s23
      %p41 = scmp.ge.s32.totalorder %s40, 2
      %s42 = scalar_select %p41, 0, %s40
      %s43 = ssub.s32 %s23, %s42
      %s44 = ssub.s32 %s24, %s38
      %s45 = sor.u32 %s43, %s44
      %p46 = scmp.eq.s32.totalorder %s45, 0
      %s48 = sadd.s32 %s47, 1
      %s49 = scalar_select %p46, %s47, %s48
      %p52 = pneg %p46
      %p53 = scmp.eq.s32.totalorder %s16, 1
      %p54 = por %p52, %p53
      %p55 = scmp.ne.s32.totalorder %s47, %s50
      %p56 = scmp.eq.s32.totalorder %s16, 0
      %p57 = por %p55, %p56
      %p58 = scmp.ne.s32.totalorder %s47, %s50
      %p59 = scmp.eq.s32.totalorder %s21, 1
      %p60 = por %p58, %p59
      %p61 = scmp.ne.s32.totalorder %s50, %s51
      %p62 = scmp.eq.s32.totalorder %s21, 0
      %p63 = por %p61, %p62
      %p64 = scmp.ne.s32.totalorder %s50, %s51
      %p65 = scmp.eq.s32.totalorder %s22, 1
      %p66 = por %p64, %p65
      %p68 = scmp.ne.s32.totalorder %s51, %s67
      %p69 = scmp.eq.s32.totalorder %s22, 0
      %p70 = por %p68, %p69
      %s71 = ssub.s32 %s25, %s34
      %p72 = scmp.eq.s32.totalorder %s71, 0
      %s74 = sadd.s32 %s73, 1
      %s75 = scalar_select %p72, %s73, %s74
      %p78 = pneg %p72
      %p79 = scmp.eq.s32.totalorder %s16, 1
      %p80 = por %p78, %p79
      %p81 = scmp.ne.s32.totalorder %s73, %s76
      %p82 = scmp.eq.s32.totalorder %s16, 0
      %p83 = por %p81, %p82
      %p84 = scmp.ne.s32.totalorder %s73, %s76
      %p85 = scmp.eq.s32.totalorder %s21, 1
      %p86 = por %p84, %p85
      %p87 = scmp.ne.s32.totalorder %s76, %s77
      %p88 = scmp.eq.s32.totalorder %s21, 0
      %p89 = por %p87, %p88
      %p90 = scmp.ne.s32.totalorder %s76, %s77
      %p91 = scmp.eq.s32.totalorder %s22, 1
      %p92 = por %p90, %p91
      %p94 = scmp.ne.s32.totalorder %s77, %s93
      %p95 = scmp.eq.s32.totalorder %s22, 0
      %p96 = por %p94, %p95
      %s97 = ssub.s32 %s25, %s34
      %p98 = scmp.eq.s32.totalorder %s97, 0
      %s100 = sadd.s32 %s99, 1
      %s101 = scalar_select %p98, %s99, %s100
      %p104 = pneg %p98
      %p105 = scmp.eq.s32.totalorder %s16, 1
      %p106 = por %p104, %p105
      %p107 = scmp.ne.s32.totalorder %s99, %s102
      %p108 = scmp.eq.s32.totalorder %s16, 0
      %p109 = por %p107, %p108
      %p110 = scmp.ne.s32.totalorder %s99, %s102
      %p111 = scmp.eq.s32.totalorder %s21, 1
      %p112 = por %p110, %p111
      %p113 = scmp.ne.s32.totalorder %s102, %s103
      %p114 = scmp.eq.s32.totalorder %s21, 0
      %p115 = por %p113, %p114
      %p116 = scmp.ne.s32.totalorder %s102, %s103
      %p117 = scmp.eq.s32.totalorder %s22, 1
      %p118 = por %p116, %p117
      %p120 = scmp.ne.s32.totalorder %s103, %s119
      %p121 = scmp.eq.s32.totalorder %s22, 0
      %p122 = por %p120, %p121
      %s123 = ssub.s32 %s23, %s42
      %s124 = ssub.s32 %s24, %s38
      %s125 = sor.u32 %s123, %s124
      %s126 = ssub.s32 %s25, %s34
      %s127 = sor.u32 %s125, %s126
      %p128 = scmp.eq.s32.totalorder %s127, 0
      %s130 = sadd.s32 %s129, 1
      %s131 = scalar_select %p128, %s129, %s130
      %p134 = pneg %p128
      %p135 = scmp.eq.s32.totalorder %s16, 1
      %p136 = por %p134, %p135
      %p137 = scmp.ne.s32.totalorder %s129, %s132
      %p138 = scmp.eq.s32.totalorder %s16, 0
      %p139 = por %p137, %p138
      %p140 = scmp.ne.s32.totalorder %s129, %s132
      %p141 = scmp.eq.s32.totalorder %s21, 1
      %p142 = por %p140, %p141
      %p143 = scmp.ne.s32.totalorder %s132, %s133
      %p144 = scmp.eq.s32.totalorder %s21, 0
      %p145 = por %p143, %p144
      %p146 = scmp.ne.s32.totalorder %s132, %s133
      %p147 = scmp.eq.s32.totalorder %s22, 1
      %p148 = por %p146, %p147
      %p150 = scmp.ne.s32.totalorder %s133, %s149
      %p151 = scmp.eq.s32.totalorder %s22, 0
      %p152 = por %p150, %p151
      %p153 = scmp.le.s32.totalorder 1, %s16
      %p154 = scmp.lt.s32.totalorder %s16, 3
      %p155 = pnand %p153, %p154
      %p156 = pneg %p155
      // Predicated region
      $region9: #{tpu_custom_call.1} parent=5 // pred_check
        _
      $region10: #{tpu_custom_call.1} parent=5 // pred_check_branch
        %158 = sbr.rel (%p155) target = $region12
      $region11: #{tpu_custom_call.1} parent=5 // pred_region
        %s159 = ssub.s32 %s16, 1
        // Predicated region
        $region13: #{tpu_custom_call.1} parent=11 // pred_check
          %p160 = pneg %p89
        $region14: #{tpu_custom_call.1} parent=11 // pred_check_branch
          %162 = sbr.rel (%p160) target = $region16
        $region15: #{tpu_custom_call.1} parent=11 // pred_region
          %s164 = ssub.s32 256, 256
          %165 = vsyncadd [#allocation6], %s164
          %s166 = smul.addr %s28, 64
          %s167 = scalar_lea.hbm %s1, %s166
          %s168 = sshll.u32 [#allocation5], 4
          %s169 = int_to_ptr.vmem [resolvable:$true] %s168
          %174 = dma.hbm_to_vmem [thread:$0]  %s167, 256, %s169, [#allocation6], 64, 64, 4
        $region16: #{tpu_custom_call.1} parent=11 // pred_fallthru
          _
        // Predicated region
        $region17: #{tpu_custom_call.1} parent=11 // pred_check
          %p175 = pneg %p115
        $region18: #{tpu_custom_call.1} parent=11 // pred_check_branch
          %177 = sbr.rel (%p175) target = $region20
        $region19: #{tpu_custom_call.1} parent=11 // pred_region
          %p178 = scmp.lt.s32.totalorder %s28, 0
          %s179 = scalar_select %p178, %s28, 0
          %s180 = scalar_lea.vmem %s2, %s179
        $region20: #{tpu_custom_call.1} parent=11 // pred_fallthru
          _
      $region12: #{tpu_custom_call.1} parent=5 // pred_fallthru
        _
      %p181 = scmp.lt.s32.totalorder %s16, 2
      // Predicated region
      $region21: #{tpu_custom_call.1} parent=5 // pred_check
        %p182 = pneg %p181
      $region22: #{tpu_custom_call.1} parent=5 // pred_check_branch
        %184 = sbr.rel (%p182) target = $region24
      $region23: #{tpu_custom_call.1} parent=5 // pred_region
        // Predicated region
        $region25: #{tpu_custom_call.1} parent=23 // pred_check
          %p185 = pneg %p57
        $region26: #{tpu_custom_call.1} parent=23 // pred_check_branch
          %187 = sbr.rel (%p185) target = $region28
        $region27: #{tpu_custom_call.1} parent=23 // pred_region
          %s188 = sand.u32 %s47, 1
          %s189 = scalar_lea.sflag [#allocation3], %s188
          %s190 = sand.u32 %s47, 1
          %s191 = smul.addr %s190, 16
          %s192 = scalar_lea.vmem [#allocation2], %s191
          %s193 = smul.u32 2, %s24
          %s195 = ssub.s32 256, 256
          %196 = vsyncadd %s189, %s195
          %s197 = smul.addr %s23, 2
          %s198 = sadd.s32 %s193, %s197
          %s199 = smul.addr %s198, 128
          %s200 = scalar_lea.hbm %s0, %s199
          %s201 = sshll.u32 %s192, 4
          %s202 = int_to_ptr.vmem [resolvable:$true] %s201
          %207 = dma.hbm_to_vmem [thread:$0]  %s200, 256, %s202, %s189, 128, 128, 8
        $region28: #{tpu_custom_call.1} parent=23 // pred_fallthru
          _
      $region24: #{tpu_custom_call.1} parent=5 // pred_fallthru
        _
      %p208 = scmp.le.s32.totalorder 1, %s16
      %p209 = scmp.lt.s32.totalorder %s16, 3
      %p210 = pnand %p208, %p209
      %p211 = pneg %p210
      // Predicated region
      $region29: #{tpu_custom_call.1} parent=5 // pred_check
        _
      $region30: #{tpu_custom_call.1} parent=5 // pred_check_branch
        %213 = sbr.rel (%p210) target = $region32
      $region31: #{tpu_custom_call.1} parent=5 // pred_region
        %s214 = ssub.s32 %s16, 1
        %s215 = sand.u32 %s50, 1
        %s216 = scalar_lea.sflag [#allocation3], %s215
        %s217 = sand.u32 %s50, 1
        %s218 = smul.addr %s217, 16
        %s219 = scalar_lea.vmem [#allocation2], %s218
        // Predicated region
        $region33: #{tpu_custom_call.1} parent=31 // pred_check
          %p220 = pneg %p63
        $region34: #{tpu_custom_call.1} parent=31 // pred_check_branch
          %222 = sbr.rel (%p220) target = $region36
        $region35: #{tpu_custom_call.1} parent=31 // pred_region
          %223 = dma.done %s216, 256
        $region36: #{tpu_custom_call.1} parent=31 // pred_fallthru
          _
        // Predicated region
        $region37: #{tpu_custom_call.1} parent=31 // pred_check
          %p224 = pneg %p89
        $region38: #{tpu_custom_call.1} parent=31 // pred_check_branch
          %226 = sbr.rel (%p224) target = $region40
        $region39: #{tpu_custom_call.1} parent=31 // pred_region
          %227 = dma.done [#allocation6], 256
        $region40: #{tpu_custom_call.1} parent=31 // pred_fallthru
          _
        %s228 = sand.u32 %s50, 1
        %s229 = scalar_lea.sflag [#allocation3], %s228
        %s230 = sand.u32 %s50, 1
        %s231 = smul.addr %s230, 16
        %s232 = scalar_lea.vmem [#allocation2], %s231
        %p233 = pneg %p63
        %p234 = pneg %p60
        %p235 = pneg %p89
        %p236 = pneg %p86
        %p237 = scmp.lt.s32.totalorder %s28, 0
        %s238 = scalar_select %p237, %s28, 0
        %s239 = scalar_lea.vmem %s2, %s238
        %p240 = pneg %p115
        %p241 = pneg %p112
        %p242 = pneg %p145
        %p243 = pneg %p142
        %s244 = sand.u32 %s132, 1
        %s245 = scalar_lea.sflag [#allocation4], %s244
        %s246 = sand.u32 %s132, 1
        %s247 = smul.addr %s246, 16
        %s248 = scalar_lea.vmem [#allocation7], %s247
        %s249 = smul.u32 2, %s27
        %p250 = scmp.lt.s32.totalorder %s28, 0
        %s251 = scalar_select %p250, %s28, 0
        %s252 = scalar_lea.vmem %s2, %s251
        %s253 = smul.u32 2, %s27
        %v255 = vld [vmem:[%s219] sm:$0xff]
        %v256 = vld [vmem:[%s219 + $0x8] sm:$0xff]
        %v257 = vpack.c.bf16 %v256, %v255
        %v258 = vld [vmem:[#allocation5] sm:$0xf]
        %v259 = vld [vmem:[#allocation5 + $0x4] sm:$0xf]
        %v260 = vld [vmem:[#allocation5 + $0x8] sm:$0xf]
        %v261 = vld [vmem:[#allocation5 + $0xc] sm:$0xf]
        %v262 = vld [vmem:[%s252] sm:$0x1]
        %v264 = vlaneseq
        %v265 = vshrl.u32 %v264, 7
        %v266 = vsub.s32 0, %v265
        %v267 = vrot.slane %v262, %v266
        %v273 = vunpack.c.l.b16 %v258
        %v274 = vunpack.c.l.b16 %v259
        %v275 = vunpack.c.l.b16 %v260
        %v276 = vunpack.c.l.b16 %v261
        %v277 = vpack.c.b16 %v274, %v273
        %v278 = vpack.c.b16 %v276, %v275
        %vm281 = vcmask 261120
        %v283 = vsel %vm281, %v257, 0
        %285 = vmatprep.subr.bf16.mxu0 0
        %286 = vmatpush1.bf16.msra.mxu0 %v277
        %287 = vmatprep.subr.bf16.mxu0 0
        %288 = vmatpush1.bf16.msra.mxu0 %v278
        %289 = vmatprep.subr.bf16.mxu0 0
        %290 = vmatpush1.bf16.msra.mxu0 0
        %291 = vmatprep.subr.bf16.mxu0 0
        %292 = vmatpush1.bf16.msra.mxu0 0
        %293 = vmatprep.subr.bf16.mxu0 0
        %294 = vmatpush1.bf16.msra.mxu0 0
        %295 = vmatprep.subr.bf16.mxu0 0
        %296 = vmatpush1.bf16.msra.mxu0 0
        %297 = vmatprep.subr.bf16.mxu0 0
        %298 = vmatpush1.bf16.msra.mxu0 0
        %299 = vmatprep.subr.bf16.mxu0 0
        %300 = vmatpush1.bf16.msra.mxu0 0
        %301 = vmatprep.subr.bf16.mxu0 0
        %302 = vmatpush1.bf16.msra.mxu0 0
        %303 = vmatprep.subr.bf16.mxu0 0
        %304 = vmatpush1.bf16.msra.mxu0 0
        %305 = vmatprep.subr.bf16.mxu0 0
        %306 = vmatpush1.bf16.msra.mxu0 0
        %307 = vmatprep.subr.bf16.mxu0 0
        %308 = vmatpush1.bf16.msra.mxu0 0
        %309 = vmatprep.subr.bf16.mxu0 0
        %310 = vmatpush1.bf16.msra.mxu0 0
        %311 = vmatprep.subr.bf16.mxu0 0
        %312 = vmatpush1.bf16.msra.mxu0 0
        %313 = vmatprep.subr.bf16.mxu0 0
        %314 = vmatpush1.bf16.msra.mxu0 0
        %315 = vmatprep.subr.bf16.mxu0 0
        %316 = vmatpush1.bf16.msra.mxu0 0
        %317 = vmatprep.mubr.bf16.mxu0 0
        %318 = vmatmul.mubr.bf16.gmra.mrb[0].mxu0 %v283
        %v319 = vpop.f32.mrb[0].mxu0
        %v320 = vadd.f32 %v267, %v319
        %v321 = vpop.f32.mrb[0].mxu0
        %v322 = vpop.f32.mrb[0].mxu0
        %v323 = vadd.f32 %v267, %v322
        %v324 = vpop.f32.mrb[0].mxu0
        %325 = vdwg.mxu0
        %326 = vst.msk [vmem:[%s248] sm:$0xff] %vm281, %v320
        %327 = vst.msk [vmem:[%s248 + $0x8] sm:$0xff] %vm281, %v323
        %s328 = sand.u32 %s132, 1
        %s329 = scalar_lea.sflag [#allocation4], %s328
        %s330 = sand.u32 %s132, 1
        %s331 = smul.addr %s330, 16
        %s332 = scalar_lea.vmem [#allocation7], %s331
        // Predicated region
        $region41: #{tpu_custom_call.1} parent=31 // pred_check
          %p333 = pneg %p142
        $region42: #{tpu_custom_call.1} parent=31 // pred_check_branch
          %335 = sbr.rel (%p333) target = $region44
        $region43: #{tpu_custom_call.1} parent=31 // pred_region
          %s336 = smul.u32 2, %s27
          %s338 = ssub.s32 256, 256
          %339 = vsyncadd %s329, %s338
          %s340 = sadd.s32 %s28, %s336
          %s341 = smul.addr %s26, 2
          %s342 = sadd.s32 %s340, %s341
          %s343 = smul.addr %s342, 128
          %s344 = scalar_lea.hbm %s3, %s343
          %s345 = sshll.u32 %s332, 4
          %s346 = int_to_ptr.vmem [resolvable:$true] %s345
          %351 = dma.vmem_to_hbm [thread:$0]  %s346, 256, %s344, %s329, 128, 128, 8
        $region44: #{tpu_custom_call.1} parent=31 // pred_fallthru
          _
      $region32: #{tpu_custom_call.1} parent=5 // pred_fallthru
        _
      %p352 = scmp.le.s32.totalorder 2, %s16
      // Predicated region
      $region45: #{tpu_custom_call.1} parent=5 // pred_check
        %p353 = pneg %p352
      $region46: #{tpu_custom_call.1} parent=5 // pred_check_branch
        %355 = sbr.rel (%p353) target = $region48
      $region47: #{tpu_custom_call.1} parent=5 // pred_region
        %s356 = ssub.s32 %s16, 2
        // Predicated region
        $region49: #{tpu_custom_call.1} parent=47 // pred_check
          %p357 = pneg %p148
        $region50: #{tpu_custom_call.1} parent=47 // pred_check_branch
          %359 = sbr.rel (%p357) target = $region52
        $region51: #{tpu_custom_call.1} parent=47 // pred_region
          %s360 = sand.u32 %s133, 1
          %s361 = scalar_lea.sflag [#allocation4], %s360
          %s362 = sand.u32 %s133, 1
          %s363 = smul.addr %s362, 16
          %s364 = scalar_lea.vmem [#allocation7], %s363
          %365 = dma.done %s361, 256
        $region52: #{tpu_custom_call.1} parent=47 // pred_fallthru
          _
      $region48: #{tpu_custom_call.1} parent=5 // pred_fallthru
        _
    $region6: #{tpu_custom_call.1} parent=1 // loop_footer
      %s20 = sadd.s32 1, %s16
    $region7: #{tpu_custom_call.1} parent=1 // loop_footer_branch
      %15 = sbr.rel target = $region3
    $region8: #{tpu_custom_call.1} parent=1 // loop_exit
      _
    %366 = vsyncpa [#allocation3], 1
    %s367 = scalar_lea.sflag [#allocation3], 1
    %368 = vsyncpa %s367, 1
    %369 = vsyncpa [#allocation6], 1
    %370 = vsyncpa [#allocation4], 1
    %s371 = scalar_lea.sflag [#allocation4], 1
    %372 = vsyncpa %s371, 1

</llo_original>
